<compile_context>
chip_gen: v5e
topology: v5e:2x2
jax: 0.10.0
libtpu: 0.0.40
codegen_flags: <defaults>
</compile_context>

<pallas_src>
import functools

import jax
import jax.numpy as jnp
from jax.experimental import pallas as pl
from jax.experimental.pallas import tpu as pltpu


def _round_up(n, m):
    return ((n + m - 1) // m) * m


def _cdiv(a, b):
    return -(-a // b)


def _rnn_chunk_kernel(x_ref, h0_ref, wih_ref, whh_ref, brnn_ref, wlin_ref, blin_ref,
                      out_ref, z_ref, h_scr, pre_buf, *, sub_t, groups_unroll):
    """One grid step = one (batch-block, time-chunk) tile.

    grid = (num_batch_blocks, num_time_chunks); time is the sequential carry axis
    (hidden state lives in h_scr across time chunks of the same batch block).
    """
    c = pl.program_id(1)                        # time-chunk index (carry axis)
    tc, bb, dp = x_ref.shape
    hp = h_scr.shape[-1]
    op = out_ref.shape[-1]
    cdt = wih_ref.dtype                         # MXU operand dtype (bf16 by default)
    n_groups = tc // sub_t

    # Load the initial hidden state for this batch block at the first time chunk.
    @pl.when(c == 0)
    def _():
        h_scr[...] = h0_ref[...].astype(jnp.float32)

    # --- Hoisted input projection: ONE (tc*bb, dp) x (dp, hp) GEMM per chunk. ---
    # pre_x[t] = x_t @ W_ih^T + (b_ih + b_hh), kept in f32.
    x_chunk = x_ref[...].reshape(tc * bb, dp)
    pre_buf[...] = (jnp.dot(x_chunk, wih_ref[...], preferred_element_type=jnp.float32)
                    + brnn_ref[...])

    whh = whh_ref[...]
    wlin = wlin_ref[...]
    blin = blin_ref[...]

    def group(g, h_carry):
        base = pl.multiple_of(g * sub_t, sub_t)

        # --- Serialized recurrence for sub_t steps (latency-bound, fully unrolled). ---
        def step(t, h_prev):
            row = pl.multiple_of((base + t) * bb, bb)
            pre = pre_buf[pl.ds(row, bb), :] + jnp.dot(
                h_prev.astype(cdt), whh, preferred_element_type=jnp.float32)
            h_new = jnp.tanh(pre)
            # Write h_t directly into the z output window (no extra VMEM copy).
            z_ref[pl.ds(base + t, 1)] = h_new[None].astype(z_ref.dtype)
            return h_new

        h_carry = jax.lax.fori_loop(0, sub_t, step, h_carry, unroll=True)

        # --- Sub-tiled output projection for this group of timesteps. ---
        # Keeps the f32 intermediate small and lets the scheduler interleave these
        # dense vmatmuls with the next group's serialized recurrence steps.
        zg = z_ref[pl.ds(base, sub_t)].reshape(sub_t * bb, hp).astype(cdt)
        og = jnp.dot(zg, wlin, preferred_element_type=jnp.float32) + blin
        out_ref[pl.ds(base, sub_t)] = og.reshape(sub_t, bb, op).astype(out_ref.dtype)
        return h_carry

    h_final = jax.lax.fori_loop(0, n_groups, group, h_scr[...], unroll=groups_unroll)
    h_scr[...] = h_final                        # carry to the next time chunk


def elman_rnn_v3_forward(x, h0, params, *, time_chunk=None, batch_block=None,
                         compute_dtype=jnp.bfloat16, vmem_budget_bytes=None):
    """x: (B, T, input_dim); h0: (1, B, hidden_dim). Returns (out, z) like PyTorch.

    compute_dtype: MXU operand dtype (bf16 recommended); accumulation, bias/tanh and
                   the hidden-state carry always stay float32.
    """
    B, T, D = x.shape
    H = params["w_hh"].shape[0]
    O = params["w_lin"].shape[0]
    cdt = jnp.dtype(compute_dtype) if compute_dtype is not None else jnp.dtype(x.dtype)
    odt = jnp.dtype(x.dtype)

    # --- Batch blocking: balanced blocks (limits padding when B is just over a block),
    #     larger blocks when B is large to fill the 256x256 MXU on v6e/v7x.
    bb_max = batch_block if batch_block is not None else (256 if B >= 256 else 128)
    bb_max = max(8, _round_up(bb_max, 8))
    nb = max(1, _cdiv(B, bb_max))
    bb = _round_up(_cdiv(B, nb), 8)
    Bp = nb * bb

    Dp = _round_up(D, 128)
    Hp = _round_up(H, 128)
    Op = _round_up(O, 128)

    # --- VMEM budget -> time-chunk size (and vmem_limit_bytes). ---
    try:
        info = pltpu.get_tpu_info()
        phys_vmem = int(getattr(info, "vmem_capacity_bytes", 64 * 1024 * 1024))
    except Exception:
        phys_vmem = 64 * 1024 * 1024          # conservative default: v7x per-TC VMEM
    budget = int(vmem_budget_bytes) if vmem_budget_bytes is not None else int(phys_vmem * 0.7)

    s_c = cdt.itemsize
    s_o = odt.itemsize
    # Resident (double-buffered) weights/biases/h0 + f32 hidden-state carry.
    fixed = (2 * (Dp * Hp + Hp * Hp + Hp * Op) * s_c
             + 2 * (Hp + Op) * 4
             + 2 * bb * Hp * 4
             + bb * Hp * 4)
    # Per-timestep bytes: double-buffered x / z / out windows + f32 pre-activation buffer.
    per_t = bb * (2 * Dp * s_c + 2 * Hp * s_o + 2 * Op * s_o + Hp * 4)
    tc_cap = max(1, (budget - fixed) // per_t)
    cap = time_chunk if time_chunk is not None else 128
    tc = max(1, int(min(tc_cap, cap, T)))
    sub_t = 8 if tc >= 8 else tc              # output-GEMM sub-tile (timesteps per GEMM)
    tc = max(sub_t, (tc // sub_t) * sub_t)
    Tp = _round_up(T, tc)
    nc = Tp // tc
    n_groups = tc // sub_t
    groups_unroll = True if n_groups <= 16 else (8 if n_groups % 8 == 0 else 4)

    est_vmem = fixed + tc * per_t
    vmem_limit = int(max(32 << 20, min(est_vmem + (16 << 20), phys_vmem - (2 << 20))))

    # --- Time-major, zero-padded operands (zero padding is exact for this recurrence:
    #     padded hidden lanes stay tanh(0)=0 and never feed real lanes). ---
    x_tm = jnp.pad(jnp.transpose(x, (1, 0, 2)),
                   ((0, Tp - T), (0, Bp - B), (0, Dp - D))).astype(cdt)
    h0_p = jnp.pad(h0[0], ((0, Bp - B), (0, Hp - H))).astype(jnp.float32)

    # Pre-transposed weights (row-major GEMMs) and pre-summed RNN bias (f32).
    w_ih_t = jnp.pad(params["w_ih"].T, ((0, Dp - D), (0, Hp - H))).astype(cdt)
    w_hh_t = jnp.pad(params["w_hh"].T, ((0, Hp - H), (0, Hp - H))).astype(cdt)
    w_lin_t = jnp.pad(params["w_lin"].T, ((0, Hp - H), (0, Op - O))).astype(cdt)
    b_rnn = jnp.pad((params["b_ih"] + params["b_hh"])[None, :],
                    ((0, 0), (0, Hp - H))).astype(jnp.float32)
    b_lin = jnp.pad(params["b_lin"][None, :], ((0, 0), (0, Op - O))).astype(jnp.float32)

    const = lambda shape: pl.BlockSpec(shape, lambda b, c, _s=len(shape): (0,) * _s)

    kernel = functools.partial(_rnn_chunk_kernel, sub_t=sub_t, groups_unroll=groups_unroll)

    out_tm, z_tm = pl.pallas_call(
        kernel,
        out_shape=(
            jax.ShapeDtypeStruct((Tp, Bp, Op), odt),
            jax.ShapeDtypeStruct((Tp, Bp, Hp), odt),
        ),
        grid_spec=pltpu.PrefetchScalarGridSpec(
            num_scalar_prefetch=0,
            grid=(nb, nc),
            in_specs=[
                pl.BlockSpec((tc, bb, Dp), lambda b, c: (c, b, 0)),   # x chunk
                pl.BlockSpec((bb, Hp), lambda b, c: (b, 0)),          # h0 batch block
                const((Dp, Hp)),                                      # W_ih^T (resident)
                const((Hp, Hp)),                                      # W_hh^T (resident)
                const((1, Hp)),                                       # b_ih + b_hh
                const((Hp, Op)),                                      # W_lin^T (resident)
                const((1, Op)),                                       # b_lin
            ],
            out_specs=[
                pl.BlockSpec((tc, bb, Op), lambda b, c: (c, b, 0)),   # out chunk
                pl.BlockSpec((tc, bb, Hp), lambda b, c: (c, b, 0)),   # z chunk
            ],
            scratch_shapes=[
                pltpu.VMEM((bb, Hp), jnp.float32),        # carried hidden state (f32)
                pltpu.VMEM((tc * bb, Hp), jnp.float32),   # pre_x chunk buffer (f32)
            ],
        ),
        compiler_params=pltpu.CompilerParams(
            # Batch blocks are independent (usable by v7x's 2nd TensorCore);
            # time chunks carry hidden state and must run sequentially.
            dimension_semantics=("parallel", "arbitrary"),
            vmem_limit_bytes=vmem_limit,
        ),
    )(x_tm, h0_p, w_ih_t, w_hh_t, b_rnn, w_lin_t, b_lin)

    # Slice away padding and return batch-first to match the PyTorch module.
    out = jnp.transpose(out_tm[:T, :B, :O], (1, 0, 2))   # (B, T, O)
    z = jnp.transpose(z_tm[:T, :B, :H], (1, 0, 2))       # (B, T, H)
    return out, z


def _reference_forward(x, h0, params):
    """Pure-JAX reference (lax.scan) for correctness checking."""
    def step(h, x_t):
        h_new = jnp.tanh(x_t @ params["w_ih"].T + params["b_ih"]
                         + h @ params["w_hh"].T + params["b_hh"])
        return h_new, h_new

    _, z_tm = jax.lax.scan(step, h0[0], jnp.transpose(x, (1, 0, 2)))
    z = jnp.transpose(z_tm, (1, 0, 2))
    out = z @ params["w_lin"].T + params["b_lin"]
    return out, z


def init_params(key, input_dim, hidden_dim, output_dim, dtype=jnp.float32):
    """Deterministic synthetic init matching PyTorch parameter shapes."""
    ks = jax.random.split(key, 6)
    s_rnn = 1.0 / jnp.sqrt(hidden_dim)
    s_lin = 1.0 / jnp.sqrt(hidden_dim)
    return {
        "w_ih": jax.random.uniform(ks[0], (hidden_dim, input_dim), dtype, -s_rnn, s_rnn),
        "w_hh": jax.random.uniform(ks[1], (hidden_dim, hidden_dim), dtype, -s_rnn, s_rnn),
        "b_ih": jax.random.uniform(ks[2], (hidden_dim,), dtype, -s_rnn, s_rnn),
        "b_hh": jax.random.uniform(ks[3], (hidden_dim,), dtype, -s_rnn, s_rnn),
        "w_lin": jax.random.uniform(ks[4], (output_dim, hidden_dim), dtype, -s_lin, s_lin),
        "b_lin": jax.random.uniform(ks[5], (output_dim,), dtype, -s_lin, s_lin),
    }


if __name__ == "__main__":
    B, T = 2, 8
    input_dim, hidden_dim, output_dim = 16, 32, 8

    key = jax.random.PRNGKey(0)
    kx, kh, kp = jax.random.split(key, 3)

    x = jax.random.normal(kx, (B, T, input_dim), jnp.float32)
    h0 = jax.random.normal(kh, (1, B, hidden_dim), jnp.float32)
    params = init_params(kp, input_dim, hidden_dim, output_dim)

    out_exp, z_exp = _reference_forward(x, h0, params)

    # 1) f32 MXU operands: bitwise-tight check against the f32 reference.
    fwd_f32 = jax.jit(functools.partial(elman_rnn_v3_forward, compute_dtype=jnp.float32))
    out32, z32 = fwd_f32(x, h0, params)
    out32 = jax.block_until_ready(out32)
    z32 = jax.block_until_ready(z32)
    assert out32.shape == (B, T, output_dim) and z32.shape == (B, T, hidden_dim)
    assert jnp.allclose(out32, out_exp, atol=1e-5, rtol=1e-5)
    assert jnp.allclose(z32, z_exp, atol=1e-5, rtol=1e-5)

    # 2) Default path (bf16 MXU operands, f32 accumulation/carry): looser tolerance.
    fwd = jax.jit(elman_rnn_v3_forward)
    out_bf, z_bf = fwd(x, h0, params)
    out_bf = jax.block_until_ready(out_bf)
    z_bf = jax.block_until_ready(z_bf)
    assert out_bf.shape == (B, T, output_dim) and z_bf.shape == (B, T, hidden_dim)
    assert jnp.allclose(out_bf, out_exp, atol=1e-1, rtol=1e-1)
    assert jnp.allclose(z_bf, z_exp, atol=1e-1, rtol=1e-1)

    print("KERNEL_OK")
</pallas_src>

<mosaic_0001>
module attributes {stable_mosaic.version = 11 : i64} {
  func.func @_rnn_chunk_kernel(%arg0: i32, %arg1: i32, %arg2: memref<8x8x128xf32, #tpu.memory_space<vmem>>, %arg3: memref<8x128xf32, #tpu.memory_space<vmem>>, %arg4: memref<128x128xf32, #tpu.memory_space<vmem>>, %arg5: memref<128x128xf32, #tpu.memory_space<vmem>>, %arg6: memref<1x128xf32, #tpu.memory_space<vmem>>, %arg7: memref<128x128xf32, #tpu.memory_space<vmem>>, %arg8: memref<1x128xf32, #tpu.memory_space<vmem>>, %arg9: memref<8x8x128xf32, #tpu.memory_space<vmem>>, %arg10: memref<8x8x128xf32, #tpu.memory_space<vmem>>, %arg11: memref<8x128xf32, #tpu.memory_space<vmem>>, %arg12: memref<64x128xf32, #tpu.memory_space<vmem>>) attributes {dimension_semantics = [#tpu.dimension_semantics<parallel>, #tpu.dimension_semantics<arbitrary>], iteration_bounds = array<i64: 1, 1>, scalar_prefetch = 0 : i64, scratch_operands = 2 : i64, tpu.core_type = #tpu.core_type<tc>, window_params = [{transform_indices = @transform_0, window_bounds = array<i64: 8, 8, 128>}, {transform_indices = @transform_1, window_bounds = array<i64: 8, 128>}, {pipeline_mode = #tpu.pipeline_mode<synchronous>, transform_indices = @transform_2, window_bounds = array<i64: 128, 128>}, {pipeline_mode = #tpu.pipeline_mode<synchronous>, transform_indices = @transform_3, window_bounds = array<i64: 128, 128>}, {pipeline_mode = #tpu.pipeline_mode<synchronous>, transform_indices = @transform_4, window_bounds = array<i64: 1, 128>}, {pipeline_mode = #tpu.pipeline_mode<synchronous>, transform_indices = @transform_5, window_bounds = array<i64: 128, 128>}, {pipeline_mode = #tpu.pipeline_mode<synchronous>, transform_indices = @transform_6, window_bounds = array<i64: 1, 128>}, {transform_indices = @transform_7, window_bounds = array<i64: 8, 8, 128>}, {transform_indices = @transform_8, window_bounds = array<i64: 8, 8, 128>}]} {
    %c0_i32 = arith.constant 0 : i32
    %0 = arith.cmpi eq, %arg1, %c0_i32 : i32
    %1 = arith.extui %0 : i1 to i32
    %c0_i32_0 = arith.constant 0 : i32
    %2 = arith.cmpi ne, %1, %c0_i32_0 : i32
    scf.if %2 {
      %c0_68 = arith.constant 0 : index
      %c0_69 = arith.constant 0 : index
      %123 = vector.load %arg3[%c0_68, %c0_69] : memref<8x128xf32, #tpu.memory_space<vmem>>, vector<8x128xf32>
      %c0_70 = arith.constant 0 : index
      %c0_71 = arith.constant 0 : index
      %124 = vector.load %arg11[%c0_70, %c0_71] : memref<8x128xf32, #tpu.memory_space<vmem>>, vector<8x128xf32>
      tpu.vector_store %arg11[%c0_70, %c0_71], %123 {strides = array<i32>} : memref<8x128xf32, #tpu.memory_space<vmem>>, vector<8x128xf32>,
    } else {
    }
    %c0 = arith.constant 0 : index
    %c0_1 = arith.constant 0 : index
    %c0_2 = arith.constant 0 : index
    %3 = vector.load %arg2[%c0, %c0_1, %c0_2] : memref<8x8x128xf32, #tpu.memory_space<vmem>>, vector<8x8x128xf32>
    %4 = vector.shape_cast %3 : vector<8x8x128xf32> to vector<64x128xf32>
    %c0_3 = arith.constant 0 : index
    %c0_4 = arith.constant 0 : index
    %5 = vector.load %arg4[%c0_3, %c0_4] : memref<128x128xf32, #tpu.memory_space<vmem>>, vector<128x128xf32>
    %cst = arith.constant dense<0.000000e+00> : vector<64x128xf32>
    %6 = tpu.matmul %4, %5, %cst {dimension_numbers = #tpu.dot_dimension_numbers<[1], [0], [0], [1], [0, 0, 1, 1], [], []>} : vector<64x128xf32>, vector<128x128xf32>, vector<64x128xf32> -> vector<64x128xf32>
    %c0_5 = arith.constant 0 : index
    %c0_6 = arith.constant 0 : index
    %7 = vector.load %arg6[%c0_5, %c0_6] : memref<1x128xf32, #tpu.memory_space<vmem>>, vector<1x128xf32>
    %8 = vector.broadcast %7 : vector<1x128xf32> to vector<64x128xf32>
    %9 = arith.addf %6, %8 : vector<64x128xf32>
    %c0_7 = arith.constant 0 : index
    %c0_8 = arith.constant 0 : index
    %10 = vector.load %arg12[%c0_7, %c0_8] : memref<64x128xf32, #tpu.memory_space<vmem>>, vector<64x128xf32>
    tpu.vector_store %arg12[%c0_7, %c0_8], %9 {strides = array<i32>} : memref<64x128xf32, #tpu.memory_space<vmem>>, vector<64x128xf32>,
    %c0_9 = arith.constant 0 : index
    %c0_10 = arith.constant 0 : index
    %11 = vector.load %arg5[%c0_9, %c0_10] : memref<128x128xf32, #tpu.memory_space<vmem>>, vector<128x128xf32>
    %c0_11 = arith.constant 0 : index
    %c0_12 = arith.constant 0 : index
    %12 = vector.load %arg7[%c0_11, %c0_12] : memref<128x128xf32, #tpu.memory_space<vmem>>, vector<128x128xf32>
    %c0_13 = arith.constant 0 : index
    %c0_14 = arith.constant 0 : index
    %13 = vector.load %arg8[%c0_13, %c0_14] : memref<1x128xf32, #tpu.memory_space<vmem>>, vector<1x128xf32>
    %c0_15 = arith.constant 0 : index
    %c0_16 = arith.constant 0 : index
    %14 = vector.load %arg11[%c0_15, %c0_16] : memref<8x128xf32, #tpu.memory_space<vmem>>, vector<8x128xf32>
    %c0_i32_17 = arith.constant 0 : i32
    %c8_i32 = arith.constant 8 : i32
    %15 = arith.muli %c0_i32_17, %c8_i32 : i32
    %16 = tpu.assume_multiple %15, 8 : i32
    %c0_i32_18 = arith.constant 0 : i32
    %17 = arith.addi %16, %c0_i32_18 : i32
    %c8_i32_19 = arith.constant 8 : i32
    %18 = arith.muli %17, %c8_i32_19 : i32
    %19 = tpu.assume_multiple %18, 8 : i32
    %20 = arith.index_cast %19 : i32 to index
    %c0_20 = arith.constant 0 : index
    %21 = vector.load %arg12[%20, %c0_20] : memref<64x128xf32, #tpu.memory_space<vmem>>, vector<8x128xf32>
    %cst_21 = arith.constant dense<0.000000e+00> : vector<8x128xf32>
    %22 = tpu.matmul %14, %11, %cst_21 {dimension_numbers = #tpu.dot_dimension_numbers<[1], [0], [0], [1], [0, 0, 1, 1], [], []>} : vector<8x128xf32>, vector<128x128xf32>, vector<8x128xf32> -> vector<8x128xf32>
    %23 = arith.addf %21, %22 : vector<8x128xf32>
    %24 = math.tanh %23 : vector<8x128xf32>
    %25 = vector.shape_cast %24 : vector<8x128xf32> to vector<1x8x128xf32>
    %26 = arith.addi %16, %c0_i32_18 : i32
    %27 = arith.index_cast %26 : i32 to index
    %c0_22 = arith.constant 0 : index
    %c0_23 = arith.constant 0 : index
    %28 = vector.load %arg10[%27, %c0_22, %c0_23] : memref<8x8x128xf32, #tpu.memory_space<vmem>>, vector<1x8x128xf32>
    tpu.vector_store %arg10[%27, %c0_22, %c0_23], %25 {strides = array<i32>} : memref<8x8x128xf32, #tpu.memory_space<vmem>>, vector<1x8x128xf32>,
    %c1_i32 = arith.constant 1 : i32
    %29 = arith.addi %16, %c1_i32 : i32
    %c8_i32_24 = arith.constant 8 : i32
    %30 = arith.muli %29, %c8_i32_24 : i32
    %31 = tpu.assume_multiple %30, 8 : i32
    %32 = arith.index_cast %31 : i32 to index
    %c0_25 = arith.constant 0 : index
    %33 = vector.load %arg12[%32, %c0_25] : memref<64x128xf32, #tpu.memory_space<vmem>>, vector<8x128xf32>
    %cst_26 = arith.constant dense<0.000000e+00> : vector<8x128xf32>
    %34 = tpu.matmul %24, %11, %cst_26 {dimension_numbers = #tpu.dot_dimension_numbers<[1], [0], [0], [1], [0, 0, 1, 1], [], []>} : vector<8x128xf32>, vector<128x128xf32>, vector<8x128xf32> -> vector<8x128xf32>
    %35 = arith.addf %33, %34 : vector<8x128xf32>
    %36 = math.tanh %35 : vector<8x128xf32>
    %37 = vector.shape_cast %36 : vector<8x128xf32> to vector<1x8x128xf32>
    %38 = arith.addi %16, %c1_i32 : i32
    %39 = arith.index_cast %38 : i32 to index
    %c0_27 = arith.constant 0 : index
    %c0_28 = arith.constant 0 : index
    %40 = vector.load %arg10[%39, %c0_27, %c0_28] : memref<8x8x128xf32, #tpu.memory_space<vmem>>, vector<1x8x128xf32>
    tpu.vector_store %arg10[%39, %c0_27, %c0_28], %37 {strides = array<i32>} : memref<8x8x128xf32, #tpu.memory_space<vmem>>, vector<1x8x128xf32>,
    %c2_i32 = arith.constant 2 : i32
    %41 = arith.addi %16, %c2_i32 : i32
    %c8_i32_29 = arith.constant 8 : i32
    %42 = arith.muli %41, %c8_i32_29 : i32
    %43 = tpu.assume_multiple %42, 8 : i32
    %44 = arith.index_cast %43 : i32 to index
    %c0_30 = arith.constant 0 : index
    %45 = vector.load %arg12[%44, %c0_30] : memref<64x128xf32, #tpu.memory_space<vmem>>, vector<8x128xf32>
    %cst_31 = arith.constant dense<0.000000e+00> : vector<8x128xf32>
    %46 = tpu.matmul %36, %11, %cst_31 {dimension_numbers = #tpu.dot_dimension_numbers<[1], [0], [0], [1], [0, 0, 1, 1], [], []>} : vector<8x128xf32>, vector<128x128xf32>, vector<8x128xf32> -> vector<8x128xf32>
    %47 = arith.addf %45, %46 : vector<8x128xf32>
    %48 = math.tanh %47 : vector<8x128xf32>
    %49 = vector.shape_cast %48 : vector<8x128xf32> to vector<1x8x128xf32>
    %50 = arith.addi %16, %c2_i32 : i32
    %51 = arith.index_cast %50 : i32 to index
    %c0_32 = arith.constant 0 : index
    %c0_33 = arith.constant 0 : index
    %52 = vector.load %arg10[%51, %c0_32, %c0_33] : memref<8x8x128xf32, #tpu.memory_space<vmem>>, vector<1x8x128xf32>
    tpu.vector_store %arg10[%51, %c0_32, %c0_33], %49 {strides = array<i32>} : memref<8x8x128xf32, #tpu.memory_space<vmem>>, vector<1x8x128xf32>,
    %c3_i32 = arith.constant 3 : i32
    %53 = arith.addi %16, %c3_i32 : i32
    %c8_i32_34 = arith.constant 8 : i32
    %54 = arith.muli %53, %c8_i32_34 : i32
    %55 = tpu.assume_multiple %54, 8 : i32
    %56 = arith.index_cast %55 : i32 to index
    %c0_35 = arith.constant 0 : index
    %57 = vector.load %arg12[%56, %c0_35] : memref<64x128xf32, #tpu.memory_space<vmem>>, vector<8x128xf32>
    %cst_36 = arith.constant dense<0.000000e+00> : vector<8x128xf32>
    %58 = tpu.matmul %48, %11, %cst_36 {dimension_numbers = #tpu.dot_dimension_numbers<[1], [0], [0], [1], [0, 0, 1, 1], [], []>} : vector<8x128xf32>, vector<128x128xf32>, vector<8x128xf32> -> vector<8x128xf32>
    %59 = arith.addf %57, %58 : vector<8x128xf32>
    %60 = math.tanh %59 : vector<8x128xf32>
    %61 = vector.shape_cast %60 : vector<8x128xf32> to vector<1x8x128xf32>
    %62 = arith.addi %16, %c3_i32 : i32
    %63 = arith.index_cast %62 : i32 to index
    %c0_37 = arith.constant 0 : index
    %c0_38 = arith.constant 0 : index
    %64 = vector.load %arg10[%63, %c0_37, %c0_38] : memref<8x8x128xf32, #tpu.memory_space<vmem>>, vector<1x8x128xf32>
    tpu.vector_store %arg10[%63, %c0_37, %c0_38], %61 {strides = array<i32>} : memref<8x8x128xf32, #tpu.memory_space<vmem>>, vector<1x8x128xf32>,
    %c4_i32 = arith.constant 4 : i32
    %65 = arith.addi %16, %c4_i32 : i32
    %c8_i32_39 = arith.constant 8 : i32
    %66 = arith.muli %65, %c8_i32_39 : i32
    %67 = tpu.assume_multiple %66, 8 : i32
    %68 = arith.index_cast %67 : i32 to index
    %c0_40 = arith.constant 0 : index
    %69 = vector.load %arg12[%68, %c0_40] : memref<64x128xf32, #tpu.memory_space<vmem>>, vector<8x128xf32>
    %cst_41 = arith.constant dense<0.000000e+00> : vector<8x128xf32>
    %70 = tpu.matmul %60, %11, %cst_41 {dimension_numbers = #tpu.dot_dimension_numbers<[1], [0], [0], [1], [0, 0, 1, 1], [], []>} : vector<8x128xf32>, vector<128x128xf32>, vector<8x128xf32> -> vector<8x128xf32>
    %71 = arith.addf %69, %70 : vector<8x128xf32>
    %72 = math.tanh %71 : vector<8x128xf32>
    %73 = vector.shape_cast %72 : vector<8x128xf32> to vector<1x8x128xf32>
    %74 = arith.addi %16, %c4_i32 : i32
    %75 = arith.index_cast %74 : i32 to index
    %c0_42 = arith.constant 0 : index
    %c0_43 = arith.constant 0 : index
    %76 = vector.load %arg10[%75, %c0_42, %c0_43] : memref<8x8x128xf32, #tpu.memory_space<vmem>>, vector<1x8x128xf32>
    tpu.vector_store %arg10[%75, %c0_42, %c0_43], %73 {strides = array<i32>} : memref<8x8x128xf32, #tpu.memory_space<vmem>>, vector<1x8x128xf32>,
    %c5_i32 = arith.constant 5 : i32
    %77 = arith.addi %16, %c5_i32 : i32
    %c8_i32_44 = arith.constant 8 : i32
    %78 = arith.muli %77, %c8_i32_44 : i32
    %79 = tpu.assume_multiple %78, 8 : i32
    %80 = arith.index_cast %79 : i32 to index
    %c0_45 = arith.constant 0 : index
    %81 = vector.load %arg12[%80, %c0_45] : memref<64x128xf32, #tpu.memory_space<vmem>>, vector<8x128xf32>
    %cst_46 = arith.constant dense<0.000000e+00> : vector<8x128xf32>
    %82 = tpu.matmul %72, %11, %cst_46 {dimension_numbers = #tpu.dot_dimension_numbers<[1], [0], [0], [1], [0, 0, 1, 1], [], []>} : vector<8x128xf32>, vector<128x128xf32>, vector<8x128xf32> -> vector<8x128xf32>
    %83 = arith.addf %81, %82 : vector<8x128xf32>
    %84 = math.tanh %83 : vector<8x128xf32>
    %85 = vector.shape_cast %84 : vector<8x128xf32> to vector<1x8x128xf32>
    %86 = arith.addi %16, %c5_i32 : i32
    %87 = arith.index_cast %86 : i32 to index
    %c0_47 = arith.constant 0 : index
    %c0_48 = arith.constant 0 : index
    %88 = vector.load %arg10[%87, %c0_47, %c0_48] : memref<8x8x128xf32, #tpu.memory_space<vmem>>, vector<1x8x128xf32>
    tpu.vector_store %arg10[%87, %c0_47, %c0_48], %85 {strides = array<i32>} : memref<8x8x128xf32, #tpu.memory_space<vmem>>, vector<1x8x128xf32>,
    %c6_i32 = arith.constant 6 : i32
    %89 = arith.addi %16, %c6_i32 : i32
    %c8_i32_49 = arith.constant 8 : i32
    %90 = arith.muli %89, %c8_i32_49 : i32
    %91 = tpu.assume_multiple %90, 8 : i32
    %92 = arith.index_cast %91 : i32 to index
    %c0_50 = arith.constant 0 : index
    %93 = vector.load %arg12[%92, %c0_50] : memref<64x128xf32, #tpu.memory_space<vmem>>, vector<8x128xf32>
    %cst_51 = arith.constant dense<0.000000e+00> : vector<8x128xf32>
    %94 = tpu.matmul %84, %11, %cst_51 {dimension_numbers = #tpu.dot_dimension_numbers<[1], [0], [0], [1], [0, 0, 1, 1], [], []>} : vector<8x128xf32>, vector<128x128xf32>, vector<8x128xf32> -> vector<8x128xf32>
    %95 = arith.addf %93, %94 : vector<8x128xf32>
    %96 = math.tanh %95 : vector<8x128xf32>
    %97 = vector.shape_cast %96 : vector<8x128xf32> to vector<1x8x128xf32>
    %98 = arith.addi %16, %c6_i32 : i32
    %99 = arith.index_cast %98 : i32 to index
    %c0_52 = arith.constant 0 : index
    %c0_53 = arith.constant 0 : index
    %100 = vector.load %arg10[%99, %c0_52, %c0_53] : memref<8x8x128xf32, #tpu.memory_space<vmem>>, vector<1x8x128xf32>
    tpu.vector_store %arg10[%99, %c0_52, %c0_53], %97 {strides = array<i32>} : memref<8x8x128xf32, #tpu.memory_space<vmem>>, vector<1x8x128xf32>,
    %c7_i32 = arith.constant 7 : i32
    %101 = arith.addi %16, %c7_i32 : i32
    %c8_i32_54 = arith.constant 8 : i32
    %102 = arith.muli %101, %c8_i32_54 : i32
    %103 = tpu.assume_multiple %102, 8 : i32
    %104 = arith.index_cast %103 : i32 to index
    %c0_55 = arith.constant 0 : index
    %105 = vector.load %arg12[%104, %c0_55] : memref<64x128xf32, #tpu.memory_space<vmem>>, vector<8x128xf32>
    %cst_56 = arith.constant dense<0.000000e+00> : vector<8x128xf32>
    %106 = tpu.matmul %96, %11, %cst_56 {dimension_numbers = #tpu.dot_dimension_numbers<[1], [0], [0], [1], [0, 0, 1, 1], [], []>} : vector<8x128xf32>, vector<128x128xf32>, vector<8x128xf32> -> vector<8x128xf32>
    %107 = arith.addf %105, %106 : vector<8x128xf32>
    %108 = math.tanh %107 : vector<8x128xf32>
    %109 = vector.shape_cast %108 : vector<8x128xf32> to vector<1x8x128xf32>
    %110 = arith.addi %16, %c7_i32 : i32
    %111 = arith.index_cast %110 : i32 to index
    %c0_57 = arith.constant 0 : index
    %c0_58 = arith.constant 0 : index
    %112 = vector.load %arg10[%111, %c0_57, %c0_58] : memref<8x8x128xf32, #tpu.memory_space<vmem>>, vector<1x8x128xf32>
    tpu.vector_store %arg10[%111, %c0_57, %c0_58], %109 {strides = array<i32>} : memref<8x8x128xf32, #tpu.memory_space<vmem>>, vector<1x8x128xf32>,
    %c8_i32_59 = arith.constant 8 : i32
    %113 = arith.index_cast %16 : i32 to index
    %c0_60 = arith.constant 0 : index
    %c0_61 = arith.constant 0 : index
    %114 = vector.load %arg10[%113, %c0_60, %c0_61] : memref<8x8x128xf32, #tpu.memory_space<vmem>>, vector<8x8x128xf32>
    %115 = vector.shape_cast %114 : vector<8x8x128xf32> to vector<64x128xf32>
    %cst_62 = arith.constant dense<0.000000e+00> : vector<64x128xf32>
    %116 = tpu.matmul %115, %12, %cst_62 {dimension_numbers = #tpu.dot_dimension_numbers<[1], [0], [0], [1], [0, 0, 1, 1], [], []>} : vector<64x128xf32>, vector<128x128xf32>, vector<64x128xf32> -> vector<64x128xf32>
    %117 = vector.broadcast %13 : vector<1x128xf32> to vector<64x128xf32>
    %118 = arith.addf %116, %117 : vector<64x128xf32>
    %119 = vector.shape_cast %118 : vector<64x128xf32> to vector<8x8x128xf32>
    %120 = arith.index_cast %16 : i32 to index
    %c0_63 = arith.constant 0 : index
    %c0_64 = arith.constant 0 : index
    %121 = vector.load %arg9[%120, %c0_63, %c0_64] : memref<8x8x128xf32, #tpu.memory_space<vmem>>, vector<8x8x128xf32>
    tpu.vector_store %arg9[%120, %c0_63, %c0_64], %119 {strides = array<i32>} : memref<8x8x128xf32, #tpu.memory_space<vmem>>, vector<8x8x128xf32>,
    %c1_i32_65 = arith.constant 1 : i32
    %c0_66 = arith.constant 0 : index
    %c0_67 = arith.constant 0 : index
    %122 = vector.load %arg11[%c0_66, %c0_67] : memref<8x128xf32, #tpu.memory_space<vmem>>, vector<8x128xf32>
    tpu.vector_store %arg11[%c0_66, %c0_67], %108 {strides = array<i32>} : memref<8x128xf32, #tpu.memory_space<vmem>>, vector<8x128xf32>,
    return
  }
  func.func @transform_0(%arg0: i32, %arg1: i32) -> (i32, i32, i32) {
    %c0_i32 = arith.constant 0 : i32
    %c0_i32_0 = arith.constant 0 : i32
    return %arg1, %arg0, %c0_i32 : i32, i32, i32
  }
  func.func @transform_1(%arg0: i32, %arg1: i32) -> (i32, i32) {
    %c0_i32 = arith.constant 0 : i32
    %c0_i32_0 = arith.constant 0 : i32
    return %arg0, %c0_i32 : i32, i32
  }
  func.func @transform_2(%arg0: i32, %arg1: i32) -> (i32, i32) {
    %c0_i32 = arith.constant 0 : i32
    %c0_i32_0 = arith.constant 0 : i32
    %c0_i32_1 = arith.constant 0 : i32
    return %c0_i32, %c0_i32_0 : i32, i32
  }
  func.func @transform_3(%arg0: i32, %arg1: i32) -> (i32, i32) {
    %c0_i32 = arith.constant 0 : i32
    %c0_i32_0 = arith.constant 0 : i32
    %c0_i32_1 = arith.constant 0 : i32
    return %c0_i32, %c0_i32_0 : i32, i32
  }
  func.func @transform_4(%arg0: i32, %arg1: i32) -> (i32, i32) {
    %c0_i32 = arith.constant 0 : i32
    %c0_i32_0 = arith.constant 0 : i32
    %c0_i32_1 = arith.constant 0 : i32
    return %c0_i32, %c0_i32_0 : i32, i32
  }
  func.func @transform_5(%arg0: i32, %arg1: i32) -> (i32, i32) {
    %c0_i32 = arith.constant 0 : i32
    %c0_i32_0 = arith.constant 0 : i32
    %c0_i32_1 = arith.constant 0 : i32
    return %c0_i32, %c0_i32_0 : i32, i32
  }
  func.func @transform_6(%arg0: i32, %arg1: i32) -> (i32, i32) {
    %c0_i32 = arith.constant 0 : i32
    %c0_i32_0 = arith.constant 0 : i32
    %c0_i32_1 = arith.constant 0 : i32
    return %c0_i32, %c0_i32_0 : i32, i32
  }
  func.func @transform_7(%arg0: i32, %arg1: i32) -> (i32, i32, i32) {
    %c0_i32 = arith.constant 0 : i32
    %c0_i32_0 = arith.constant 0 : i32
    return %arg1, %arg0, %c0_i32 : i32, i32, i32
  }
  func.func @transform_8(%arg0: i32, %arg1: i32) -> (i32, i32, i32) {
    %c0_i32 = arith.constant 0 : i32
    %c0_i32_0 = arith.constant 0 : i32
    return %arg1, %arg0, %c0_i32 : i32, i32, i32
  }
}

</mosaic_0001>

<llo_original>
// kernel: elman_rnn_v3_forward.1
$region0: #{elman_rnn_v3_forward.1}
  #allocation0 [shape = 'u32[]', space=smem, size = 0x4, offset = 0x4, fixed_abs, tag = 'smem constant byte address 0x4 - core index']
  #allocation1 [shape = 'u32[72,128]{1,0:T(1,128)}', space=vmem, size = 0x9000, scoped, tag = 'internal scratch']
  #allocation2 [shape = 'f32[8,128]{1,0:T(8,128)}', space=vmem, size = 0x1000, scoped, tag = 'scratch operand']
  #allocation3 [shape = 'f32[64,128]{1,0:T(8,128)}', space=vmem, size = 0x8000, scoped, tag = 'scratch operand']
  %s0 = inlined_call_operand.vmem [shape: f32[8,8,128], index: 0, kind: input, shape index: {}]
  %s1 = inlined_call_operand.vmem [shape: f32[8,128], index: 1, kind: input, shape index: {}]
  %s2 = inlined_call_operand.vmem [shape: f32[128,128], index: 2, kind: input, shape index: {}]
  %s3 = inlined_call_operand.vmem [shape: f32[128,128], index: 3, kind: input, shape index: {}]
  %s4 = inlined_call_operand.vmem [shape: f32[1,128], index: 4, kind: input, shape index: {}]
  %s5 = inlined_call_operand.vmem [shape: f32[128,128], index: 5, kind: input, shape index: {}]
  %s6 = inlined_call_operand.vmem [shape: f32[1,128], index: 6, kind: input, shape index: {}]
  %s7 = inlined_call_operand.vmem [shape: f32[8,8,128], index: 7, kind: output, shape index: {0}]
  %s8 = inlined_call_operand.vmem [shape: f32[8,8,128], index: 8, kind: output, shape index: {1}]
  %9 = xla_tuple %s7, %s8
  %s10 = sld [smem:[#allocation0]]
  $region50: #{elman_rnn_v3_forward.1} parent=0
    _
  %s12 = ssub.s32 1, %s10
  %s13 = scalar_select 0, %s12, %s10
  // Predicated region
  $region2: #{elman_rnn_v3_forward.1} parent=0 // pred_check
    _
  $region3: #{elman_rnn_v3_forward.1} parent=0 // pred_check_branch
    %15 = sbr.rel (0) target = $region5
  $region4: #{elman_rnn_v3_forward.1} parent=0 // pred_region
    _
  $region5: #{elman_rnn_v3_forward.1} parent=0 // pred_fallthru
    _
  // Predicated region
  $region6: #{elman_rnn_v3_forward.1} parent=0 // pred_check
    _
  $region7: #{elman_rnn_v3_forward.1} parent=0 // pred_check_branch
    %17 = sbr.rel (0) target = $region9
  $region8: #{elman_rnn_v3_forward.1} parent=0 // pred_region
    _
  $region9: #{elman_rnn_v3_forward.1} parent=0 // pred_fallthru
    _
  // Predicated region
  $region10: #{elman_rnn_v3_forward.1} parent=0 // pred_check
    _
  $region11: #{elman_rnn_v3_forward.1} parent=0 // pred_check_branch
    %19 = sbr.rel (0) target = $region13
  $region12: #{elman_rnn_v3_forward.1} parent=0 // pred_region
    _
  $region13: #{elman_rnn_v3_forward.1} parent=0 // pred_fallthru
    _
  // Predicated region
  $region14: #{elman_rnn_v3_forward.1} parent=0 // pred_check
    _
  $region15: #{elman_rnn_v3_forward.1} parent=0 // pred_check_branch
    %21 = sbr.rel (0) target = $region17
  $region16: #{elman_rnn_v3_forward.1} parent=0 // pred_region
    _
  $region17: #{elman_rnn_v3_forward.1} parent=0 // pred_fallthru
    _
  // Predicated region
  $region18: #{elman_rnn_v3_forward.1} parent=0 // pred_check
    _
  $region19: #{elman_rnn_v3_forward.1} parent=0 // pred_check_branch
    %23 = sbr.rel (0) target = $region21
  $region20: #{elman_rnn_v3_forward.1} parent=0 // pred_region
    _
  $region21: #{elman_rnn_v3_forward.1} parent=0 // pred_fallthru
    _
  // Predicated region
  $region22: #{elman_rnn_v3_forward.1} parent=0 // pred_check
    _
  $region23: #{elman_rnn_v3_forward.1} parent=0 // pred_check_branch
    %25 = sbr.rel (0) target = $region25
  $region24: #{elman_rnn_v3_forward.1} parent=0 // pred_region
    _
  $region25: #{elman_rnn_v3_forward.1} parent=0 // pred_fallthru
    _
  // Predicated region
  $region26: #{elman_rnn_v3_forward.1} parent=0 // pred_check
    _
  $region27: #{elman_rnn_v3_forward.1} parent=0 // pred_check_branch
    %27 = sbr.rel (0) target = $region29
  $region28: #{elman_rnn_v3_forward.1} parent=0 // pred_region
    _
  $region29: #{elman_rnn_v3_forward.1} parent=0 // pred_fallthru
    _
  %p28 = scmp.eq.s32.totalorder 0, 0
  // Predicated region
  $region30: #{elman_rnn_v3_forward.1} parent=0 // pred_check
    %p29 = pneg %p28
  $region31: #{elman_rnn_v3_forward.1} parent=0 // pred_check_branch
    %31 = sbr.rel (%p29) target = $region33
  $region32: #{elman_rnn_v3_forward.1} parent=0 // pred_region
    %v32 = vld [vmem:[%s1] sm:$0xff]
    %33 = vst [vmem:[#allocation2] sm:$0xff] %v32
  $region33: #{elman_rnn_v3_forward.1} parent=0 // pred_fallthru
    _
  %v34 = vld [vmem:[%s0] sm:$0xff]
  %v35 = vld [vmem:[%s0 + $0x8] sm:$0xff]
  %v36 = vld [vmem:[%s0 + $0x10] sm:$0xff]
  %v37 = vld [vmem:[%s0 + $0x18] sm:$0xff]
  %v38 = vld [vmem:[%s0 + $0x20] sm:$0xff]
  %v39 = vld [vmem:[%s0 + $0x28] sm:$0xff]
  %v40 = vld [vmem:[%s0 + $0x30] sm:$0xff]
  %v41 = vld [vmem:[%s0 + $0x38] sm:$0xff]
  %v42 = vld [vmem:[%s2] sm:$0xff]
  %v43 = vld [vmem:[%s2 + $0x8] sm:$0xff]
  %v44 = vld [vmem:[%s2 + $0x10] sm:$0xff]
  %v45 = vld [vmem:[%s2 + $0x18] sm:$0xff]
  %v46 = vld [vmem:[%s2 + $0x20] sm:$0xff]
  %v47 = vld [vmem:[%s2 + $0x28] sm:$0xff]
  %v48 = vld [vmem:[%s2 + $0x30] sm:$0xff]
  %v49 = vld [vmem:[%s2 + $0x38] sm:$0xff]
  %v50 = vld [vmem:[%s2 + $0x40] sm:$0xff]
  %v51 = vld [vmem:[%s2 + $0x48] sm:$0xff]
  %v52 = vld [vmem:[%s2 + $0x50] sm:$0xff]
  %v53 = vld [vmem:[%s2 + $0x58] sm:$0xff]
  %v54 = vld [vmem:[%s2 + $0x60] sm:$0xff]
  %v55 = vld [vmem:[%s2 + $0x68] sm:$0xff]
  %v56 = vld [vmem:[%s2 + $0x70] sm:$0xff]
  %v57 = vld [vmem:[%s2 + $0x78] sm:$0xff]
  %v58 = vld [vmem:[%s4] sm:$0x1]
  %v60 = vperm.slane %v58, 0
  %62 = vmatpush.msra.mxu0 %v57
  %63 = vmatpush.msra.mxu0 %v56
  %64 = vmatpush.msra.mxu0 %v55
  %65 = vmatpush.msra.mxu0 %v54
  %66 = vmatpush.msra.mxu0 %v53
  %67 = vmatpush.msra.mxu0 %v52
  %68 = vmatpush.msra.mxu0 %v51
  %69 = vmatpush.msra.mxu0 %v50
  %70 = vmatpush.msra.mxu0 %v49
  %71 = vmatpush.msra.mxu0 %v48
  %72 = vmatpush.msra.mxu0 %v47
  %73 = vmatpush.msra.mxu0 %v46
  %74 = vmatpush.msra.mxu0 %v45
  %75 = vmatpush.msra.mxu0 %v44
  %76 = vmatpush.msra.mxu0 %v43
  %77 = vmatpush.msra.mxu0 %v42
  %78 = vmatmul.f32.gmra.mxu0 %v34
  %v79 = vpop.f32.mrf.mxu0
  %v80 = vadd.f32 %v60, %v79
  %81 = vmatmul.f32.gmra.mxu0 %v35
  %v82 = vpop.f32.mrf.mxu0
  %v83 = vadd.f32 %v60, %v82
  %84 = vmatmul.f32.gmra.mxu0 %v36
  %v85 = vpop.f32.mrf.mxu0
  %v86 = vadd.f32 %v60, %v85
  %87 = vmatmul.f32.gmra.mxu0 %v37
  %v88 = vpop.f32.mrf.mxu0
  %v89 = vadd.f32 %v60, %v88
  %90 = vmatmul.f32.gmra.mxu0 %v38
  %v91 = vpop.f32.mrf.mxu0
  %v92 = vadd.f32 %v60, %v91
  %93 = vmatmul.f32.gmra.mxu0 %v39
  %v94 = vpop.f32.mrf.mxu0
  %v95 = vadd.f32 %v60, %v94
  %96 = vmatmul.f32.gmra.mxu0 %v40
  %v97 = vpop.f32.mrf.mxu0
  %v98 = vadd.f32 %v60, %v97
  %99 = vmatmul.f32.gmra.mxu0 %v41
  %v100 = vpop.f32.mrf.mxu0
  %v101 = vadd.f32 %v60, %v100
  %102 = vdwg.mxu0
  %103 = vst [vmem:[#allocation3] sm:$0xff] %v80
  %104 = vst [vmem:[#allocation3 + $0x8] sm:$0xff] %v83
  %105 = vst [vmem:[#allocation3 + $0x10] sm:$0xff] %v86
  %106 = vst [vmem:[#allocation3 + $0x18] sm:$0xff] %v89
  %107 = vst [vmem:[#allocation3 + $0x20] sm:$0xff] %v92
  %108 = vst [vmem:[#allocation3 + $0x28] sm:$0xff] %v95
  %109 = vst [vmem:[#allocation3 + $0x30] sm:$0xff] %v98
  %110 = vst [vmem:[#allocation3 + $0x38] sm:$0xff] %v101
  %v111 = vld [vmem:[%s3] sm:$0xff]
  %v112 = vld [vmem:[%s3 + $0x8] sm:$0xff]
  %v113 = vld [vmem:[%s3 + $0x10] sm:$0xff]
  %v114 = vld [vmem:[%s3 + $0x18] sm:$0xff]
  %v115 = vld [vmem:[%s3 + $0x20] sm:$0xff]
  %v116 = vld [vmem:[%s3 + $0x28] sm:$0xff]
  %v117 = vld [vmem:[%s3 + $0x30] sm:$0xff]
  %v118 = vld [vmem:[%s3 + $0x38] sm:$0xff]
  %v119 = vld [vmem:[%s3 + $0x40] sm:$0xff]
  %v120 = vld [vmem:[%s3 + $0x48] sm:$0xff]
  %v121 = vld [vmem:[%s3 + $0x50] sm:$0xff]
  %v122 = vld [vmem:[%s3 + $0x58] sm:$0xff]
  %v123 = vld [vmem:[%s3 + $0x60] sm:$0xff]
  %v124 = vld [vmem:[%s3 + $0x68] sm:$0xff]
  %v125 = vld [vmem:[%s3 + $0x70] sm:$0xff]
  %v126 = vld [vmem:[%s3 + $0x78] sm:$0xff]
  %v127 = vld [vmem:[%s5] sm:$0xff]
  %v128 = vld [vmem:[%s5 + $0x8] sm:$0xff]
  %v129 = vld [vmem:[%s5 + $0x10] sm:$0xff]
  %v130 = vld [vmem:[%s5 + $0x18] sm:$0xff]
  %v131 = vld [vmem:[%s5 + $0x20] sm:$0xff]
  %v132 = vld [vmem:[%s5 + $0x28] sm:$0xff]
  %v133 = vld [vmem:[%s5 + $0x30] sm:$0xff]
  %v134 = vld [vmem:[%s5 + $0x38] sm:$0xff]
  %v135 = vld [vmem:[%s5 + $0x40] sm:$0xff]
  %v136 = vld [vmem:[%s5 + $0x48] sm:$0xff]
  %v137 = vld [vmem:[%s5 + $0x50] sm:$0xff]
  %v138 = vld [vmem:[%s5 + $0x58] sm:$0xff]
  %v139 = vld [vmem:[%s5 + $0x60] sm:$0xff]
  %v140 = vld [vmem:[%s5 + $0x68] sm:$0xff]
  %v141 = vld [vmem:[%s5 + $0x70] sm:$0xff]
  %v142 = vld [vmem:[%s5 + $0x78] sm:$0xff]
  %v143 = vld [vmem:[%s6] sm:$0x1]
  %v144 = vld [vmem:[#allocation2] sm:$0xff]
  %s145 = smul.u32 0, 8
  %s146 = scalar_lea.vmem [#allocation3], %s145
  %v147 = vld [vmem:[%s146] sm:$0xff]
  %148 = vmatpush.msra.mxu0 %v126
  %149 = vmatpush.msra.mxu0 %v125
  %150 = vmatpush.msra.mxu0 %v124
  %151 = vmatpush.msra.mxu0 %v123
  %152 = vmatpush.msra.mxu0 %v122
  %153 = vmatpush.msra.mxu0 %v121
  %154 = vmatpush.msra.mxu0 %v120
  %155 = vmatpush.msra.mxu0 %v119
  %156 = vmatpush.msra.mxu0 %v118
  %157 = vmatpush.msra.mxu0 %v117
  %158 = vmatpush.msra.mxu0 %v116
  %159 = vmatpush.msra.mxu0 %v115
  %160 = vmatpush.msra.mxu0 %v114
  %161 = vmatpush.msra.mxu0 %v113
  %162 = vmatpush.msra.mxu0 %v112
  %163 = vmatpush.msra.mxu0 %v111
  %164 = vmatmul.f32.gmra.mxu0 %v144
  %v165 = vpop.f32.mrf.mxu0
  %v166 = vadd.f32 0.0, %v165
  %167 = vdwg.mxu0
  %v168 = vadd.f32 %v147, %v166
  %v169 = vtanh.pop %v168
  %s170 = scalar_lea.vmem %s8, %s145
  %171 = vst [vmem:[%s170] sm:$0xff] %v169
  %s172 = sadd.s32 0, 1
  %s173 = smul.u32 %s172, 8
  %s174 = scalar_lea.vmem [#allocation3], %s173
  %v175 = vld [vmem:[%s174] sm:$0xff]
  %176 = vmatpush.msra.mxu0 %v126
  %177 = vmatpush.msra.mxu0 %v125
  %178 = vmatpush.msra.mxu0 %v124
  %179 = vmatpush.msra.mxu0 %v123
  %180 = vmatpush.msra.mxu0 %v122
  %181 = vmatpush.msra.mxu0 %v121
  %182 = vmatpush.msra.mxu0 %v120
  %183 = vmatpush.msra.mxu0 %v119
  %184 = vmatpush.msra.mxu0 %v118
  %185 = vmatpush.msra.mxu0 %v117
  %186 = vmatpush.msra.mxu0 %v116
  %187 = vmatpush.msra.mxu0 %v115
  %188 = vmatpush.msra.mxu0 %v114
  %189 = vmatpush.msra.mxu0 %v113
  %190 = vmatpush.msra.mxu0 %v112
  %191 = vmatpush.msra.mxu0 %v111
  %192 = vmatmul.f32.gmra.mxu0 %v169
  %v193 = vpop.f32.mrf.mxu0
  %v194 = vadd.f32 0.0, %v193
  %195 = vdwg.mxu0
  %v196 = vadd.f32 %v175, %v194
  %v197 = vtanh.pop %v196
  %s198 = scalar_lea.vmem %s8, %s173
  %199 = vst [vmem:[%s198] sm:$0xff] %v197
  %s200 = sadd.s32 0, 2
  %s201 = smul.u32 %s200, 8
  %s202 = scalar_lea.vmem [#allocation3], %s201
  %v203 = vld [vmem:[%s202] sm:$0xff]
  %204 = vmatpush.msra.mxu0 %v126
  %205 = vmatpush.msra.mxu0 %v125
  %206 = vmatpush.msra.mxu0 %v124
  %207 = vmatpush.msra.mxu0 %v123
  %208 = vmatpush.msra.mxu0 %v122
  %209 = vmatpush.msra.mxu0 %v121
  %210 = vmatpush.msra.mxu0 %v120
  %211 = vmatpush.msra.mxu0 %v119
  %212 = vmatpush.msra.mxu0 %v118
  %213 = vmatpush.msra.mxu0 %v117
  %214 = vmatpush.msra.mxu0 %v116
  %215 = vmatpush.msra.mxu0 %v115
  %216 = vmatpush.msra.mxu0 %v114
  %217 = vmatpush.msra.mxu0 %v113
  %218 = vmatpush.msra.mxu0 %v112
  %219 = vmatpush.msra.mxu0 %v111
  %220 = vmatmul.f32.gmra.mxu0 %v197
  %v221 = vpop.f32.mrf.mxu0
  %v222 = vadd.f32 0.0, %v221
  %223 = vdwg.mxu0
  %v224 = vadd.f32 %v203, %v222
  %v225 = vtanh.pop %v224
  %s226 = scalar_lea.vmem %s8, %s201
  %227 = vst [vmem:[%s226] sm:$0xff] %v225
  %s228 = sadd.s32 0, 3
  %s229 = smul.u32 %s228, 8
  %s230 = scalar_lea.vmem [#allocation3], %s229
  %v231 = vld [vmem:[%s230] sm:$0xff]
  %232 = vmatpush.msra.mxu0 %v126
  %233 = vmatpush.msra.mxu0 %v125
  %234 = vmatpush.msra.mxu0 %v124
  %235 = vmatpush.msra.mxu0 %v123
  %236 = vmatpush.msra.mxu0 %v122
  %237 = vmatpush.msra.mxu0 %v121
  %238 = vmatpush.msra.mxu0 %v120
  %239 = vmatpush.msra.mxu0 %v119
  %240 = vmatpush.msra.mxu0 %v118
  %241 = vmatpush.msra.mxu0 %v117
  %242 = vmatpush.msra.mxu0 %v116
  %243 = vmatpush.msra.mxu0 %v115
  %244 = vmatpush.msra.mxu0 %v114
  %245 = vmatpush.msra.mxu0 %v113
  %246 = vmatpush.msra.mxu0 %v112
  %247 = vmatpush.msra.mxu0 %v111
  %248 = vmatmul.f32.gmra.mxu0 %v225
  %v249 = vpop.f32.mrf.mxu0
  %v250 = vadd.f32 0.0, %v249
  %251 = vdwg.mxu0
  %v252 = vadd.f32 %v231, %v250
  %v253 = vtanh.pop %v252
  %s254 = scalar_lea.vmem %s8, %s229
  %255 = vst [vmem:[%s254] sm:$0xff] %v253
  %s256 = sadd.s32 0, 4
  %s257 = smul.u32 %s256, 8
  %s258 = scalar_lea.vmem [#allocation3], %s257
  %v259 = vld [vmem:[%s258] sm:$0xff]
  %260 = vmatpush.msra.mxu0 %v126
  %261 = vmatpush.msra.mxu0 %v125
  %262 = vmatpush.msra.mxu0 %v124
  %263 = vmatpush.msra.mxu0 %v123
  %264 = vmatpush.msra.mxu0 %v122
  %265 = vmatpush.msra.mxu0 %v121
  %266 = vmatpush.msra.mxu0 %v120
  %267 = vmatpush.msra.mxu0 %v119
  %268 = vmatpush.msra.mxu0 %v118
  %269 = vmatpush.msra.mxu0 %v117
  %270 = vmatpush.msra.mxu0 %v116
  %271 = vmatpush.msra.mxu0 %v115
  %272 = vmatpush.msra.mxu0 %v114
  %273 = vmatpush.msra.mxu0 %v113
  %274 = vmatpush.msra.mxu0 %v112
  %275 = vmatpush.msra.mxu0 %v111
  %276 = vmatmul.f32.gmra.mxu0 %v253
  %v277 = vpop.f32.mrf.mxu0
  %v278 = vadd.f32 0.0, %v277
  %279 = vdwg.mxu0
  %v280 = vadd.f32 %v259, %v278
  %v281 = vtanh.pop %v280
  %s282 = scalar_lea.vmem %s8, %s257
  %283 = vst [vmem:[%s282] sm:$0xff] %v281
  %s284 = sadd.s32 0, 5
  %s285 = smul.u32 %s284, 8
  %s286 = scalar_lea.vmem [#allocation3], %s285
  %v287 = vld [vmem:[%s286] sm:$0xff]
  %288 = vmatpush.msra.mxu0 %v126
  %289 = vmatpush.msra.mxu0 %v125
  %290 = vmatpush.msra.mxu0 %v124
  %291 = vmatpush.msra.mxu0 %v123
  %292 = vmatpush.msra.mxu0 %v122
  %293 = vmatpush.msra.mxu0 %v121
  %294 = vmatpush.msra.mxu0 %v120
  %295 = vmatpush.msra.mxu0 %v119
  %296 = vmatpush.msra.mxu0 %v118
  %297 = vmatpush.msra.mxu0 %v117
  %298 = vmatpush.msra.mxu0 %v116
  %299 = vmatpush.msra.mxu0 %v115
  %300 = vmatpush.msra.mxu0 %v114
  %301 = vmatpush.msra.mxu0 %v113
  %302 = vmatpush.msra.mxu0 %v112
  %303 = vmatpush.msra.mxu0 %v111
  %304 = vmatmul.f32.gmra.mxu0 %v281
  %v305 = vpop.f32.mrf.mxu0
  %v306 = vadd.f32 0.0, %v305
  %307 = vdwg.mxu0
  %v308 = vadd.f32 %v287, %v306
  %v309 = vtanh.pop %v308
  %s310 = scalar_lea.vmem %s8, %s285
  %311 = vst [vmem:[%s310] sm:$0xff] %v309
  %s312 = sadd.s32 0, 6
  %s313 = smul.u32 %s312, 8
  %s314 = scalar_lea.vmem [#allocation3], %s313
  %v315 = vld [vmem:[%s314] sm:$0xff]
  %316 = vmatpush.msra.mxu0 %v126
  %317 = vmatpush.msra.mxu0 %v125
  %318 = vmatpush.msra.mxu0 %v124
  %319 = vmatpush.msra.mxu0 %v123
  %320 = vmatpush.msra.mxu0 %v122
  %321 = vmatpush.msra.mxu0 %v121
  %322 = vmatpush.msra.mxu0 %v120
  %323 = vmatpush.msra.mxu0 %v119
  %324 = vmatpush.msra.mxu0 %v118
  %325 = vmatpush.msra.mxu0 %v117
  %326 = vmatpush.msra.mxu0 %v116
  %327 = vmatpush.msra.mxu0 %v115
  %328 = vmatpush.msra.mxu0 %v114
  %329 = vmatpush.msra.mxu0 %v113
  %330 = vmatpush.msra.mxu0 %v112
  %331 = vmatpush.msra.mxu0 %v111
  %332 = vmatmul.f32.gmra.mxu0 %v309
  %v333 = vpop.f32.mrf.mxu0
  %v334 = vadd.f32 0.0, %v333
  %335 = vdwg.mxu0
  %v336 = vadd.f32 %v315, %v334
  %v337 = vtanh.pop %v336
  %s338 = scalar_lea.vmem %s8, %s313
  %339 = vst [vmem:[%s338] sm:$0xff] %v337
  %s340 = sadd.s32 0, 7
  %s341 = smul.u32 %s340, 8
  %s342 = scalar_lea.vmem [#allocation3], %s341
  %v343 = vld [vmem:[%s342] sm:$0xff]
  %344 = vmatpush.msra.mxu0 %v126
  %345 = vmatpush.msra.mxu0 %v125
  %346 = vmatpush.msra.mxu0 %v124
  %347 = vmatpush.msra.mxu0 %v123
  %348 = vmatpush.msra.mxu0 %v122
  %349 = vmatpush.msra.mxu0 %v121
  %350 = vmatpush.msra.mxu0 %v120
  %351 = vmatpush.msra.mxu0 %v119
  %352 = vmatpush.msra.mxu0 %v118
  %353 = vmatpush.msra.mxu0 %v117
  %354 = vmatpush.msra.mxu0 %v116
  %355 = vmatpush.msra.mxu0 %v115
  %356 = vmatpush.msra.mxu0 %v114
  %357 = vmatpush.msra.mxu0 %v113
  %358 = vmatpush.msra.mxu0 %v112
  %359 = vmatpush.msra.mxu0 %v111
  %360 = vmatmul.f32.gmra.mxu0 %v337
  %v361 = vpop.f32.mrf.mxu0
  %v362 = vadd.f32 0.0, %v361
  %363 = vdwg.mxu0
  %v364 = vadd.f32 %v343, %v362
  %v365 = vtanh.pop %v364
  %s366 = scalar_lea.vmem %s8, %s341
  %367 = vst [vmem:[%s366] sm:$0xff] %v365
  %v368 = vld [vmem:[%s170] sm:$0xff]
  %v369 = vld [vmem:[%s170 + $0x8] sm:$0xff]
  %v370 = vld [vmem:[%s170 + $0x10] sm:$0xff]
  %v371 = vld [vmem:[%s170 + $0x18] sm:$0xff]
  %v372 = vld [vmem:[%s170 + $0x20] sm:$0xff]
  %v373 = vld [vmem:[%s170 + $0x28] sm:$0xff]
  %v374 = vld [vmem:[%s170 + $0x30] sm:$0xff]
  %v375 = vld [vmem:[%s170 + $0x38] sm:$0xff]
  %v377 = vperm.slane %v143, 0
  %379 = vmatpush.msra.mxu0 %v142
  %380 = vmatpush.msra.mxu0 %v141
  %381 = vmatpush.msra.mxu0 %v140
  %382 = vmatpush.msra.mxu0 %v139
  %383 = vmatpush.msra.mxu0 %v138
  %384 = vmatpush.msra.mxu0 %v137
  %385 = vmatpush.msra.mxu0 %v136
  %386 = vmatpush.msra.mxu0 %v135
  %387 = vmatpush.msra.mxu0 %v134
  %388 = vmatpush.msra.mxu0 %v133
  %389 = vmatpush.msra.mxu0 %v132
  %390 = vmatpush.msra.mxu0 %v131
  %391 = vmatpush.msra.mxu0 %v130
  %392 = vmatpush.msra.mxu0 %v129
  %393 = vmatpush.msra.mxu0 %v128
  %394 = vmatpush.msra.mxu0 %v127
  %395 = vmatmul.f32.gmra.mxu0 %v368
  %v396 = vpop.f32.mrf.mxu0
  %v397 = vadd.f32 %v377, %v396
  %398 = vmatmul.f32.gmra.mxu0 %v369
  %v399 = vpop.f32.mrf.mxu0
  %v400 = vadd.f32 %v377, %v399
  %401 = vmatmul.f32.gmra.mxu0 %v370
  %v402 = vpop.f32.mrf.mxu0
  %v403 = vadd.f32 %v377, %v402
  %404 = vmatmul.f32.gmra.mxu0 %v371
  %v405 = vpop.f32.mrf.mxu0
  %v406 = vadd.f32 %v377, %v405
  %407 = vmatmul.f32.gmra.mxu0 %v372
  %v408 = vpop.f32.mrf.mxu0
  %v409 = vadd.f32 %v377, %v408
  %410 = vmatmul.f32.gmra.mxu0 %v373
  %v411 = vpop.f32.mrf.mxu0
  %v412 = vadd.f32 %v377, %v411
  %413 = vmatmul.f32.gmra.mxu0 %v374
  %v414 = vpop.f32.mrf.mxu0
  %v415 = vadd.f32 %v377, %v414
  %416 = vmatmul.f32.gmra.mxu0 %v375
  %v417 = vpop.f32.mrf.mxu0
  %v418 = vadd.f32 %v377, %v417
  %419 = vdwg.mxu0
  %s420 = scalar_lea.vmem %s7, %s145
  %421 = vst [vmem:[%s420] sm:$0xff] %v397
  %422 = vst [vmem:[%s420 + $0x8] sm:$0xff] %v400
  %423 = vst [vmem:[%s420 + $0x10] sm:$0xff] %v403
  %424 = vst [vmem:[%s420 + $0x18] sm:$0xff] %v406
  %425 = vst [vmem:[%s420 + $0x20] sm:$0xff] %v409
  %426 = vst [vmem:[%s420 + $0x28] sm:$0xff] %v412
  %427 = vst [vmem:[%s420 + $0x30] sm:$0xff] %v415
  %428 = vst [vmem:[%s420 + $0x38] sm:$0xff] %v418
  %429 = vst [vmem:[#allocation2] sm:$0xff] %v365
  // Predicated region
  $region34: #{elman_rnn_v3_forward.1} parent=0 // pred_check
    _
  $region35: #{elman_rnn_v3_forward.1} parent=0 // pred_check_branch
    %431 = sbr.rel (0) target = $region37
  $region36: #{elman_rnn_v3_forward.1} parent=0 // pred_region
    _
  $region37: #{elman_rnn_v3_forward.1} parent=0 // pred_fallthru
    _
  // Predicated region
  $region38: #{elman_rnn_v3_forward.1} parent=0 // pred_check
    _
  $region39: #{elman_rnn_v3_forward.1} parent=0 // pred_check_branch
    %433 = sbr.rel (0) target = $region41
  $region40: #{elman_rnn_v3_forward.1} parent=0 // pred_region
    _
  $region41: #{elman_rnn_v3_forward.1} parent=0 // pred_fallthru
    _
  // Predicated region
  $region42: #{elman_rnn_v3_forward.1} parent=0 // pred_check
    _
  $region43: #{elman_rnn_v3_forward.1} parent=0 // pred_check_branch
    %435 = sbr.rel (0) target = $region45
  $region44: #{elman_rnn_v3_forward.1} parent=0 // pred_region
    _
  $region45: #{elman_rnn_v3_forward.1} parent=0 // pred_fallthru
    _
  // Predicated region
  $region46: #{elman_rnn_v3_forward.1} parent=0 // pred_check
    _
  $region47: #{elman_rnn_v3_forward.1} parent=0 // pred_check_branch
    %437 = sbr.rel (0) target = $region49
  $region48: #{elman_rnn_v3_forward.1} parent=0 // pred_region
    _
  $region49: #{elman_rnn_v3_forward.1} parent=0 // pred_fallthru
    _

</llo_original>
